<compile_context>
chip_gen: v6e
topology: v6e:2x2x1
jax: 0.10.0
libtpu: 0.0.40
codegen_flags: <defaults>
</compile_context>

<pallas_src>
import functools

import jax
import jax.numpy as jnp
from jax.experimental import pallas as pl
from jax.experimental.pallas import tpu as pltpu


def ser_kernel(layer_ref, feats_ref, w_ref, b_ref, out_ref, acc_ref,
               *, t_total, t_tile, chunk_t):
    # layer_ref: SMEM scalar-prefetch ref (consumed by the index_maps only)
    # feats_ref: (b_tile, t_tile, H) VMEM tile of the selected layer
    # w_ref:     (H, C) classifier weight
    # b_ref:     (1, C) classifier bias
    # out_ref:   (1, b_tile, C) logits tile
    # acc_ref:   (b_tile, H) f32 running time-sum
    del layer_ref
    t = pl.program_id(1)
    n_t = pl.num_programs(1)

    @pl.when(t == 0)
    def _zero():
        acc_ref[...] = jnp.zeros_like(acc_ref)

    def add_chunk(start, size, masked):
        # Upcast only a bounded (b_tile, size, H) chunk to f32.
        x = feats_ref[:, pl.ds(start, size), :].astype(jnp.float32)
        if masked:
            # Select-based mask (NaN-safe for undefined OOB rows) built from
            # a (1, size, 1) iota, broadcast inside the where.
            local = jax.lax.broadcasted_iota(jnp.int32, (1, size, 1), 1)
            time_idx = t * t_tile + start + local
            x = jnp.where(time_idx < t_total, x, 0.0)
        acc_ref[...] += jnp.sum(x, axis=1)

    n_full = t_tile // chunk_t
    tail = t_tile - n_full * chunk_t

    def reduce_tile(masked):
        if n_full == 1:
            add_chunk(0, chunk_t, masked)
        else:
            @pl.loop(0, n_full)
            def _chunks(c):
                start = pl.multiple_of(c * chunk_t, chunk_t)
                add_chunk(start, chunk_t, masked)
        if tail > 0:
            add_chunk(n_full * chunk_t, tail, masked)

    ragged = (t_total % t_tile) != 0
    if ragged:
        # Hot path: full tiles, no masking work at all.
        @pl.when(t != n_t - 1)
        def _full_tiles():
            reduce_tile(masked=False)

        # Cold path: only the last T tile pays iota + compare + select.
        @pl.when(t == n_t - 1)
        def _last_tile():
            reduce_tile(masked=True)
    else:
        reduce_tile(masked=False)

    @pl.when(t == n_t - 1)
    def _finalize():
        pooled = acc_ref[...] * (1.0 / t_total)        # torch .mean(dim=1)
        logits = jnp.dot(pooled, w_ref[...],
                         preferred_element_type=jnp.float32)
        out_ref[0] = logits + b_ref[...]


def ser_forward(hidden_states, w, b, layer_to_extract, *,
                t_tile=None, chunk_t=None):
    """hidden_states: (L, B, T, H) f32/bf16; w: (H, C); b: (C,).

    Pass bf16 hidden_states for the bandwidth-bound fast path; accumulation
    and the classifier matmul stay in f32.
    """
    L, B, T, H = hidden_states.shape
    C = w.shape[1]
    itemsize = hidden_states.dtype.itemsize

    # Batch tiling: guarantee >= 2 programs on the 'parallel' axis whenever
    # possible so v7x's second TensorCore streams HBM too.
    if B >= 16 and B % 8 == 0:
        b_tile = 8
    elif B >= 2 and B % 2 == 0:
        b_tile = B // 2
    else:
        # TODO(synk): for B == 1 (or odd B), split the T reduction into two
        # parallel halves with per-core partial accumulators + tiny epilogue.
        b_tile = B
    b_tiles = B // b_tile

    # Generation-aware tile / VMEM budgeting.
    try:
        vmem_cap = int(pltpu.get_tpu_info().vmem_capacity_bytes)
    except Exception:  # pragma: no cover - conservative fallback
        vmem_cap = 64 * 1024 * 1024
    if vmem_cap >= 100 * 1024 * 1024:          # v5e / v6e: 128 MiB VMEM
        per_buf_target = 20 * 1024 * 1024
        vmem_limit_cap = 96 * 1024 * 1024
    else:                                       # v7x: 64 MiB VMEM per TC
        per_buf_target = 11 * 1024 * 1024
        vmem_limit_cap = 48 * 1024 * 1024

    # Sublane packing granularity: 8 for f32, 16 for bf16, 32 for int8.
    t_gran = max(8, 32 // itemsize)

    if t_tile is None:
        if b_tile * T * H * itemsize <= per_buf_target:
            t_tile = T
        else:
            t_tile = (per_buf_target // (b_tile * H * itemsize)) // t_gran * t_gran
            t_tile = max(t_gran, min(t_tile, T))

    if chunk_t is None:
        chunk_t = 128
    chunk_t = max(1, min(chunk_t, t_tile))

    t_tiles = pl.cdiv(T, t_tile)

    layer_idx = jnp.array([layer_to_extract], dtype=jnp.int32)
    w32 = w.astype(jnp.float32)
    b2d = b.reshape(1, C).astype(jnp.float32)

    grid_spec = pltpu.PrefetchScalarGridSpec(
        num_scalar_prefetch=1,
        grid=(b_tiles, t_tiles),
        in_specs=[
            # Data-dependent layer selection via the scalar-prefetched index.
            pl.BlockSpec((pl.Squeezed(), b_tile, t_tile, H),
                         lambda bi, ti, layer: (layer[0], bi, ti, 0)),
            pl.BlockSpec((H, C), lambda bi, ti, layer: (0, 0)),
            pl.BlockSpec((1, C), lambda bi, ti, layer: (0, 0)),
        ],
        # 3-D output (b_tiles, b_tile, C) keeps the block equal to the full
        # trailing dims regardless of b_tile; reshaped to (B, C) outside.
        out_specs=pl.BlockSpec((1, b_tile, C),
                               lambda bi, ti, layer: (bi, 0, 0)),
        scratch_shapes=[pltpu.VMEM((b_tile, H), jnp.float32)],
    )

    # Explicit VMEM budget: double-buffered feats tile + bounded f32 chunk
    # temporaries + resident params/accumulator/output. No extra 2x hedge.
    feat_tile_bytes = b_tile * t_tile * H * itemsize
    chunk_f32_bytes = b_tile * chunk_t * H * 4
    fixed_bytes = (H * C + C + b_tile * C + b_tile * H) * 4
    vmem_needed = 2 * feat_tile_bytes + 2 * chunk_f32_bytes + 2 * fixed_bytes
    vmem_limit = int(min(max(vmem_needed + (4 << 20), 16 << 20),
                         vmem_limit_cap))

    cost = pl.CostEstimate(
        flops=B * T * H + 2 * B * H * C,
        transcendentals=0,
        bytes_accessed=B * T * H * itemsize + (H * C + C + B * C) * 4,
    )

    kernel = functools.partial(ser_kernel, t_total=T, t_tile=t_tile,
                               chunk_t=chunk_t)

    out = pl.pallas_call(
        kernel,
        out_shape=jax.ShapeDtypeStruct((b_tiles, b_tile, C), jnp.float32),
        grid_spec=grid_spec,
        compiler_params=pltpu.CompilerParams(
            dimension_semantics=("parallel", "arbitrary"),
            vmem_limit_bytes=vmem_limit),
        cost_estimate=cost,
    )(layer_idx, hidden_states, w32, b2d)
    return out.reshape(B, C)


if __name__ == "__main__":
    key = jax.random.PRNGKey(0)
    k_hs, k_w, k_b, k_hs2 = jax.random.split(key, 4)

    # Small shapes consistent with the forward pass.
    L, B, T, H, C = 3, 2, 8, 32, 4
    layer_to_extract = 1

    hidden_states = jax.random.normal(k_hs, (L, B, T, H), dtype=jnp.float32)
    w = jax.random.normal(k_w, (H, C), dtype=jnp.float32) * 0.1
    b = jax.random.normal(k_b, (C,), dtype=jnp.float32) * 0.1

    # Case 1: single T tile, f32 stream, batch split across the parallel axis.
    logits = jax.block_until_ready(
        ser_forward(hidden_states, w, b, layer_to_extract))
    ref = hidden_states[layer_to_extract].mean(axis=1) @ w + b
    assert logits.shape == (B, C)
    assert jnp.allclose(logits, ref, atol=1e-5, rtol=1e-5)

    # Case 2: tiled T reduction with a ragged tail (exercises accumulator
    # init/finalize and the cold masked last-tile path).
    T2 = 20
    hs2 = jax.random.normal(k_hs2, (L, B, T2, H), dtype=jnp.float32)
    logits2 = jax.block_until_ready(
        ser_forward(hs2, w, b, layer_to_extract, t_tile=8))
    ref2 = hs2[layer_to_extract].mean(axis=1) @ w + b
    assert jnp.allclose(logits2, ref2, atol=1e-5, rtol=1e-5)

    # Case 3: bf16-streamed features (halved HBM traffic), f32 accumulation.
    hs2_bf16 = hs2.astype(jnp.bfloat16)
    logits3 = jax.block_until_ready(
        ser_forward(hs2_bf16, w, b, layer_to_extract, t_tile=8))
    ref3 = hs2_bf16[layer_to_extract].astype(jnp.float32).mean(axis=1) @ w + b
    assert jnp.allclose(logits3, ref3, atol=1e-3, rtol=1e-3)

    print("KERNEL_OK")
</pallas_src>

<mosaic_0001>
module attributes {stable_mosaic.version = 11 : i64} {
  func.func @ser_kernel(%arg0: i32, %arg1: i32, %arg2: memref<1xi32, #tpu.memory_space<smem>>, %arg3: memref<1x1x8x32xf32, #tpu.memory_space<vmem>>, %arg4: memref<32x4xf32, #tpu.memory_space<vmem>>, %arg5: memref<1x4xf32, #tpu.memory_space<vmem>>, %arg6: memref<1x1x4xf32, #tpu.memory_space<vmem>>, %arg7: memref<1x32xf32, #tpu.memory_space<vmem>>) attributes {dimension_semantics = [#tpu.dimension_semantics<parallel>, #tpu.dimension_semantics<arbitrary>], iteration_bounds = array<i64: 2, 1>, scalar_prefetch = 1 : i64, scratch_operands = 1 : i64, tpu.core_type = #tpu.core_type<tc>, window_params = [{transform_indices = @transform_0, window_bounds = array<i64: 1, 1, 8, 32>}, {pipeline_mode = #tpu.pipeline_mode<synchronous>, transform_indices = @transform_1, window_bounds = array<i64: 32, 4>}, {pipeline_mode = #tpu.pipeline_mode<synchronous>, transform_indices = @transform_2, window_bounds = array<i64: 1, 4>}, {transform_indices = @transform_3, window_bounds = array<i64: 1, 1, 4>}]} {
    %c0_i32 = arith.constant 0 : i32
    %0 = arith.cmpi eq, %arg1, %c0_i32 : i32
    %1 = arith.extui %0 : i1 to i32
    %c0_i32_0 = arith.constant 0 : i32
    %2 = arith.cmpi ne, %1, %c0_i32_0 : i32
    scf.if %2 {
      %cst_10 = arith.constant 0.000000e+00 : f32
      %12 = vector.broadcast %cst_10 : f32 to vector<1x32xf32>
      %c0_11 = arith.constant 0 : index
      %c0_12 = arith.constant 0 : index
      %13 = vector.load %arg7[%c0_11, %c0_12] : memref<1x32xf32, #tpu.memory_space<vmem>>, vector<1x32xf32>
      tpu.vector_store %arg7[%c0_11, %c0_12], %12 {strides = array<i32>} : memref<1x32xf32, #tpu.memory_space<vmem>>, vector<1x32xf32>,
    } else {
    }
    %c0 = arith.constant 0 : index
    %c0_1 = arith.constant 0 : index
    %c0_2 = arith.constant 0 : index
    %c0_3 = arith.constant 0 : index
    %3 = vector.load %arg3[%c0, %c0_1, %c0_2, %c0_3] : memref<1x1x8x32xf32, #tpu.memory_space<vmem>>, vector<1x1x8x32xf32>
    %4 = vector.shape_cast %3 : vector<1x1x8x32xf32> to vector<1x8x32xf32>
    %c0_4 = arith.constant 0 : index
    %c0_5 = arith.constant 0 : index
    %5 = vector.load %arg7[%c0_4, %c0_5] : memref<1x32xf32, #tpu.memory_space<vmem>>, vector<1x32xf32>
    %cst = arith.constant dense<0.000000e+00> : vector<1x32xf32>
    %6 = vector.multi_reduction <add>, %4, %cst [1] : vector<1x8x32xf32> to vector<1x32xf32>
    %7 = arith.addf %5, %6 : vector<1x32xf32>
    %c0_6 = arith.constant 0 : index
    %c0_7 = arith.constant 0 : index
    %8 = vector.load %arg7[%c0_6, %c0_7] : memref<1x32xf32, #tpu.memory_space<vmem>>, vector<1x32xf32>
    tpu.vector_store %arg7[%c0_6, %c0_7], %7 {strides = array<i32>} : memref<1x32xf32, #tpu.memory_space<vmem>>, vector<1x32xf32>,
    %c0_i32_8 = arith.constant 0 : i32
    %9 = arith.cmpi eq, %arg1, %c0_i32_8 : i32
    %10 = arith.extui %9 : i1 to i32
    %c0_i32_9 = arith.constant 0 : i32
    %11 = arith.cmpi ne, %10, %c0_i32_9 : i32
    scf.if %11 {
      %c0_10 = arith.constant 0 : index
      %c0_11 = arith.constant 0 : index
      %12 = vector.load %arg7[%c0_10, %c0_11] : memref<1x32xf32, #tpu.memory_space<vmem>>, vector<1x32xf32>
      %cst_12 = arith.constant 1.250000e-01 : f32
      %13 = vector.broadcast %cst_12 : f32 to vector<1x32xf32>
      %14 = arith.mulf %12, %13 : vector<1x32xf32>
      %c0_13 = arith.constant 0 : index
      %c0_14 = arith.constant 0 : index
      %15 = vector.load %arg4[%c0_13, %c0_14] : memref<32x4xf32, #tpu.memory_space<vmem>>, vector<32x4xf32>
      %cst_15 = arith.constant dense<0.000000e+00> : vector<1x4xf32>
      %16 = tpu.matmul %14, %15, %cst_15 {dimension_numbers = #tpu.dot_dimension_numbers<[1], [0], [0], [1], [0, 0, 1, 1], [], []>} : vector<1x32xf32>, vector<32x4xf32>, vector<1x4xf32> -> vector<1x4xf32>
      %c0_16 = arith.constant 0 : index
      %c0_17 = arith.constant 0 : index
      %17 = vector.load %arg5[%c0_16, %c0_17] : memref<1x4xf32, #tpu.memory_space<vmem>>, vector<1x4xf32>
      %18 = arith.addf %16, %17 : vector<1x4xf32>
      %c0_18 = arith.constant 0 : index
      %c0_19 = arith.constant 0 : index
      %c0_20 = arith.constant 0 : index
      %19 = vector.load %arg6[%c0_18, %c0_19, %c0_20] : memref<1x1x4xf32, #tpu.memory_space<vmem>>, vector<1x1x4xf32>
      %20 = vector.shape_cast %19 : vector<1x1x4xf32> to vector<1x4xf32>
      %21 = vector.shape_cast %18 : vector<1x4xf32> to vector<1x1x4xf32>
      tpu.vector_store %arg6[%c0_18, %c0_19, %c0_20], %21 {strides = array<i32>} : memref<1x1x4xf32, #tpu.memory_space<vmem>>, vector<1x1x4xf32>,
    } else {
    }
    return
  }
  func.func @transform_0(%arg0: i32, %arg1: i32, %arg2: memref<1xi32, #tpu.memory_space<smem>>) -> (i32, i32, i32, i32) {
    %c0 = arith.constant 0 : index
    %0 = memref.load %arg2[%c0] : memref<1xi32, #tpu.memory_space<smem>>
    %c0_i32 = arith.constant 0 : i32
    %c0_i32_0 = arith.constant 0 : i32
    return %0, %arg0, %arg1, %c0_i32 : i32, i32, i32, i32
  }
  func.func @transform_1(%arg0: i32, %arg1: i32, %arg2: memref<1xi32, #tpu.memory_space<smem>>) -> (i32, i32) {
    %c0_i32 = arith.constant 0 : i32
    %c0_i32_0 = arith.constant 0 : i32
    %c0_i32_1 = arith.constant 0 : i32
    return %c0_i32, %c0_i32_0 : i32, i32
  }
  func.func @transform_2(%arg0: i32, %arg1: i32, %arg2: memref<1xi32, #tpu.memory_space<smem>>) -> (i32, i32) {
    %c0_i32 = arith.constant 0 : i32
    %c0_i32_0 = arith.constant 0 : i32
    %c0_i32_1 = arith.constant 0 : i32
    return %c0_i32, %c0_i32_0 : i32, i32
  }
  func.func @transform_3(%arg0: i32, %arg1: i32, %arg2: memref<1xi32, #tpu.memory_space<smem>>) -> (i32, i32, i32) {
    %c0_i32 = arith.constant 0 : i32
    %c0_i32_0 = arith.constant 0 : i32
    %c0_i32_1 = arith.constant 0 : i32
    return %arg0, %c0_i32, %c0_i32_0 : i32, i32, i32
  }
}

</mosaic_0001>

<llo_original>
// kernel: tpu_custom_call.1
$region0: #{tpu_custom_call.1}
  #allocation0 [shape = 'u32[]', space=smem, size = 0x4, offset = 0x4, fixed_abs, tag = 'smem constant byte address 0x4 - core index']
  #allocation1 [shape = 'u32[144,128]{1,0:T(1,128)}', space=vmem, size = 0x12000, scoped, tag = 'internal scratch']
  #allocation2 [shape = 'f32[1,32]{1,0:T(1,128)}', space=vmem, size = 0x200, scoped, tag = 'scratch operand']
  #allocation3 [shape = 's32[1]{0}', space=sflag, size = 0x4, scoped, tag = 'scoped memory for tpu_custom_call.1']
  #allocation4 [shape = 's32[1]{0:T(128)S(6)}', space=smem, size = 0x200, scoped, tag = 'prefetched SMEM operand 0']
  %s0 = inlined_call_operand.<no memory space> [shape: s32[1], index: 0, kind: input, shape index: {}]
  %s1 = inlined_call_operand.hbm [shape: f32[3,2,8,32], index: 1, kind: input, shape index: {}]
  %s2 = inlined_call_operand.vmem [shape: f32[32,4], index: 2, kind: input, shape index: {}]
  %s3 = inlined_call_operand.vmem [shape: f32[1,4], index: 3, kind: input, shape index: {}]
  %s4 = inlined_call_operand.hbm [shape: f32[2,1,4], index: 4, kind: output, shape index: {}]
  %s5 = sld [smem:[#allocation0]]
  $region57: #{tpu_custom_call.1} parent=0
    _
  %s7 = ssub.s32 1, %s5
  %s8 = scalar_select 0, %s7, %s5
  %9 = sst [smem:[#allocation4]] %s0
  $region1: #{tpu_custom_call.1} parent=0
    #allocation5 [shape = 'u8[8192]{0}', space=vmem, size = 0x2000, scoped, tag = 'input window, operand 1']
    #allocation6 [shape = 's32[2]{0}', space=sflag, size = 0x8, scoped, tag = 'scoped memory for tpu_custom_call.1']
    #allocation7 [shape = 's32[2]{0}', space=sflag, size = 0x8, scoped, tag = 'scoped memory for tpu_custom_call.1']
    #allocation8 [shape = 'u8[1024]{0}', space=vmem, size = 0x400, scoped, tag = 'output window, operand 0']
    %10 = vsyncpa [#allocation6], 0
    %s11 = scalar_lea.sflag [#allocation6], 1
    %12 = vsyncpa %s11, 0
    %13 = vsyncpa [#allocation7], 0
    %s14 = scalar_lea.sflag [#allocation7], 1
    %15 = vsyncpa %s14, 0
    loop: start=0, step=1, limit=4
    $region2: #{tpu_custom_call.1} parent=1 // loop_pre_header
      _
    $region3: #{tpu_custom_call.1} parent=1 // loop_header
      %s17 = sphi 0, %s21
      %p18 = scmp.ge.s32.totalorder %s17, 4
      %s24 = sphi 0, %s36
      %s25 = sphi 0, %s32
      %s26 = sphi 0, %s24
      %s27 = sphi 0, %s25
      %s28 = sphi 0, %s26
      %s29 = sphi 0, %s27
      %s45 = sphi 0, %s47
      %s48 = sphi 0, %s45
      %s49 = sphi 0, %s48
      %s65 = sphi 0, %s49
      %s69 = sphi 0, %s69
      %s71 = sphi 0, %s69
      %s72 = sphi 0, %s71
      %s86 = sphi 0, %s72
      %s90 = sphi 0, %s90
      %s92 = sphi 0, %s90
      %s93 = sphi 0, %s92
      %s107 = sphi 0, %s93
      %s113 = sphi 0, %s115
      %s116 = sphi 0, %s113
      %s117 = sphi 0, %s116
      %s133 = sphi 0, %s117
    $region4: #{tpu_custom_call.1} parent=1 // loop_header_branch
      %20 = sbr.rel (%p18) target = $region8
    $region5: #{tpu_custom_call.1} parent=1 // loop_body
      %s22 = ssub.s32 %s17, 1
      %s23 = ssub.s32 %s17, 2
      %s30 = sadd.s32 1, %s25
      %p31 = scmp.ge.s32.totalorder %s30, 1
      %s32 = scalar_select %p31, 0, %s30
      %s33 = sadd.s32 1, %s24
      %s34 = scalar_select %p31, %s33, %s24
      %p35 = scmp.ge.s32.totalorder %s34, 2
      %s36 = scalar_select %p35, 0, %s34
      %s37 = sld [smem:[#allocation4]]
      %s38 = sld [smem:[#allocation4]]
      %s39 = ssub.s32 %s37, %s38
      %s40 = ssub.s32 %s24, %s36
      %s41 = sor.u32 %s39, %s40
      %s42 = ssub.s32 %s25, %s32
      %s43 = sor.u32 %s41, %s42
      %p44 = scmp.eq.s32.totalorder %s43, 0
      %s46 = sadd.s32 %s45, 1
      %s47 = scalar_select %p44, %s45, %s46
      %p50 = pneg %p44
      %p51 = scmp.eq.s32.totalorder %s17, 1
      %p52 = por %p50, %p51
      %p53 = scmp.ne.s32.totalorder %s45, %s48
      %p54 = scmp.eq.s32.totalorder %s17, 0
      %p55 = por %p53, %p54
      %p56 = scmp.ne.s32.totalorder %s45, %s48
      %p57 = scmp.eq.s32.totalorder %s22, 1
      %p58 = por %p56, %p57
      %p59 = scmp.ne.s32.totalorder %s48, %s49
      %p60 = scmp.eq.s32.totalorder %s22, 0
      %p61 = por %p59, %p60
      %p62 = scmp.ne.s32.totalorder %s48, %s49
      %p63 = scmp.eq.s32.totalorder %s23, 1
      %p64 = por %p62, %p63
      %p66 = scmp.ne.s32.totalorder %s49, %s65
      %p67 = scmp.eq.s32.totalorder %s23, 0
      %p68 = por %p66, %p67
      %s70 = sadd.s32 %s69, 1
      %p73 = scmp.eq.s32.totalorder %s17, 1
      %p74 = scmp.ne.s32.totalorder %s69, %s71
      %p75 = scmp.eq.s32.totalorder %s17, 0
      %p76 = por %p74, %p75
      %p77 = scmp.ne.s32.totalorder %s69, %s71
      %p78 = scmp.eq.s32.totalorder %s22, 1
      %p79 = por %p77, %p78
      %p80 = scmp.ne.s32.totalorder %s71, %s72
      %p81 = scmp.eq.s32.totalorder %s22, 0
      %p82 = por %p80, %p81
      %p83 = scmp.ne.s32.totalorder %s71, %s72
      %p84 = scmp.eq.s32.totalorder %s23, 1
      %p85 = por %p83, %p84
      %p87 = scmp.ne.s32.totalorder %s72, %s86
      %p88 = scmp.eq.s32.totalorder %s23, 0
      %p89 = por %p87, %p88
      %s91 = sadd.s32 %s90, 1
      %p94 = scmp.eq.s32.totalorder %s17, 1
      %p95 = scmp.ne.s32.totalorder %s90, %s92
      %p96 = scmp.eq.s32.totalorder %s17, 0
      %p97 = por %p95, %p96
      %p98 = scmp.ne.s32.totalorder %s90, %s92
      %p99 = scmp.eq.s32.totalorder %s22, 1
      %p100 = por %p98, %p99
      %p101 = scmp.ne.s32.totalorder %s92, %s93
      %p102 = scmp.eq.s32.totalorder %s22, 0
      %p103 = por %p101, %p102
      %p104 = scmp.ne.s32.totalorder %s92, %s93
      %p105 = scmp.eq.s32.totalorder %s23, 1
      %p106 = por %p104, %p105
      %p108 = scmp.ne.s32.totalorder %s93, %s107
      %p109 = scmp.eq.s32.totalorder %s23, 0
      %p110 = por %p108, %p109
      %s111 = ssub.s32 %s24, %s36
      %p112 = scmp.eq.s32.totalorder %s111, 0
      %s114 = sadd.s32 %s113, 1
      %s115 = scalar_select %p112, %s113, %s114
      %p118 = pneg %p112
      %p119 = scmp.eq.s32.totalorder %s17, 1
      %p120 = por %p118, %p119
      %p121 = scmp.ne.s32.totalorder %s113, %s116
      %p122 = scmp.eq.s32.totalorder %s17, 0
      %p123 = por %p121, %p122
      %p124 = scmp.ne.s32.totalorder %s113, %s116
      %p125 = scmp.eq.s32.totalorder %s22, 1
      %p126 = por %p124, %p125
      %p127 = scmp.ne.s32.totalorder %s116, %s117
      %p128 = scmp.eq.s32.totalorder %s22, 0
      %p129 = por %p127, %p128
      %p130 = scmp.ne.s32.totalorder %s116, %s117
      %p131 = scmp.eq.s32.totalorder %s23, 1
      %p132 = por %p130, %p131
      %p134 = scmp.ne.s32.totalorder %s117, %s133
      %p135 = scmp.eq.s32.totalorder %s23, 0
      %p136 = por %p134, %p135
      %p137 = scmp.le.s32.totalorder 1, %s17
      %p138 = scmp.lt.s32.totalorder %s17, 3
      %p139 = pnand %p137, %p138
      %p140 = pneg %p139
      // Predicated region
      $region9: #{tpu_custom_call.1} parent=5 // pred_check
        _
      $region10: #{tpu_custom_call.1} parent=5 // pred_check_branch
        %142 = sbr.rel (%p139) target = $region12
      $region11: #{tpu_custom_call.1} parent=5 // pred_region
        %s143 = ssub.s32 %s17, 1
        // Predicated region
        $region13: #{tpu_custom_call.1} parent=11 // pred_check
          %p144 = pneg %p82
        $region14: #{tpu_custom_call.1} parent=11 // pred_check_branch
          %146 = sbr.rel (%p144) target = $region16
        $region15: #{tpu_custom_call.1} parent=11 // pred_region
          _
        $region16: #{tpu_custom_call.1} parent=11 // pred_fallthru
          _
        // Predicated region
        $region17: #{tpu_custom_call.1} parent=11 // pred_check
          %p147 = pneg %p103
        $region18: #{tpu_custom_call.1} parent=11 // pred_check_branch
          %149 = sbr.rel (%p147) target = $region20
        $region19: #{tpu_custom_call.1} parent=11 // pred_region
          _
        $region20: #{tpu_custom_call.1} parent=11 // pred_fallthru
          _
      $region12: #{tpu_custom_call.1} parent=5 // pred_fallthru
        _
      %p150 = scmp.lt.s32.totalorder %s17, 2
      // Predicated region
      $region21: #{tpu_custom_call.1} parent=5 // pred_check
        %p151 = pneg %p150
      $region22: #{tpu_custom_call.1} parent=5 // pred_check_branch
        %153 = sbr.rel (%p151) target = $region24
      $region23: #{tpu_custom_call.1} parent=5 // pred_region
        // Predicated region
        $region25: #{tpu_custom_call.1} parent=23 // pred_check
          %p154 = pneg %p55
        $region26: #{tpu_custom_call.1} parent=23 // pred_check_branch
          %156 = sbr.rel (%p154) target = $region28
        $region27: #{tpu_custom_call.1} parent=23 // pred_region
          %s157 = sand.u32 %s45, 1
          %s158 = scalar_lea.sflag [#allocation6], %s157
          %s159 = sand.u32 %s45, 1
          %s160 = smul.addr %s159, 8
          %s161 = scalar_lea.vmem [#allocation5], %s160
          %s162 = sld [smem:[#allocation4]]
          %s164 = ssub.s32 128, 128
          %165 = vsyncadd %s158, %s164
          %s166 = sadd.s32 %s25, %s24
          %s167 = smul.addr %s162, 2
          %s168 = sadd.s32 %s166, %s167
          %s169 = smul.addr %s168, 128
          %s170 = scalar_lea.hbm %s1, %s169
          %s172 = sshll.u32 %s161, 4
          %s173 = int_to_ptr.vmem [resolvable:$true] %s172
          %175 = dma.hbm_to_vmem [thread:$0]  %s170, 128, %s173, %s158
        $region28: #{tpu_custom_call.1} parent=23 // pred_fallthru
          _
      $region24: #{tpu_custom_call.1} parent=5 // pred_fallthru
        _
      %p176 = scmp.le.s32.totalorder 1, %s17
      %p177 = scmp.lt.s32.totalorder %s17, 3
      %p178 = pnand %p176, %p177
      %p179 = pneg %p178
      // Predicated region
      $region29: #{tpu_custom_call.1} parent=5 // pred_check
        _
      $region30: #{tpu_custom_call.1} parent=5 // pred_check_branch
        %181 = sbr.rel (%p178) target = $region32
      $region31: #{tpu_custom_call.1} parent=5 // pred_region
        %s182 = ssub.s32 %s17, 1
        %s183 = sand.u32 %s48, 1
        %s184 = scalar_lea.sflag [#allocation6], %s183
        %s185 = sand.u32 %s48, 1
        %s186 = smul.addr %s185, 8
        %s187 = scalar_lea.vmem [#allocation5], %s186
        // Predicated region
        $region33: #{tpu_custom_call.1} parent=31 // pred_check
          %p188 = pneg %p61
        $region34: #{tpu_custom_call.1} parent=31 // pred_check_branch
          %190 = sbr.rel (%p188) target = $region36
        $region35: #{tpu_custom_call.1} parent=31 // pred_region
          %191 = dma.done %s184, 128
        $region36: #{tpu_custom_call.1} parent=31 // pred_fallthru
          _
        %s192 = sand.u32 %s48, 1
        %s193 = scalar_lea.sflag [#allocation6], %s192
        %s194 = sand.u32 %s48, 1
        %s195 = smul.addr %s194, 8
        %s196 = scalar_lea.vmem [#allocation5], %s195
        %p197 = pneg %p61
        %p198 = pneg %p58
        %p199 = pneg %p82
        %p200 = pneg %p79
        %p201 = pneg %p103
        %p202 = pneg %p100
        %p203 = pneg %p129
        %p204 = pneg %p126
        %s205 = sand.u32 %s116, 1
        %s206 = scalar_lea.sflag [#allocation7], %s205
        %s207 = sand.u32 %s116, 1
        %s208 = scalar_lea.vmem [#allocation8], %s207
        %s209 = sld [smem:[#allocation4]]
        %p210 = scmp.eq.s32.totalorder %s27, 0
        // Predicated region
        $region37: #{tpu_custom_call.1} parent=31 // pred_check
          %p211 = pneg %p210
        $region38: #{tpu_custom_call.1} parent=31 // pred_check_branch
          %213 = sbr.rel (%p211) target = $region40
        $region39: #{tpu_custom_call.1} parent=31 // pred_region
          %vm214 = vcmask 253952
          %215 = vst.msk [vmem:[#allocation2] sm:$0x1] %vm214, 0.0
        $region40: #{tpu_custom_call.1} parent=31 // pred_fallthru
          _
        %v216 = vld [vmem:[%s187] sm:$0xff]
        %v217 = vld [vmem:[#allocation2] sm:$0x1]
        %vm218 = vcmask 261120
        %v219 = vsel %vm218, %v216, 0.0
        %v220 = vrot.slane %v219, 4
        %v221 = vadd.f32 %v219, %v220
        %v222 = vrot.slane %v221, 2
        %v223 = vadd.f32 %v221, %v222
        %v224 = vrot.slane %v223, 1
        %v225 = vadd.f32 %v223, %v224
        %v226 = vadd.f32 %v217, %v225
        %vm227 = vcmask 253952
        %228 = vst.msk [vmem:[#allocation2] sm:$0x1] %vm227, %v226
        // Predicated region
        $region41: #{tpu_custom_call.1} parent=31 // pred_check
          %p229 = pneg %p210
        $region42: #{tpu_custom_call.1} parent=31 // pred_check_branch
          %231 = sbr.rel (%p229) target = $region44
        $region43: #{tpu_custom_call.1} parent=31 // pred_region
          %v232 = vld [vmem:[#allocation2] sm:$0x1]
          %v233 = vmul.f32 %v232, 0.125
          %v234 = vld [vmem:[%s2] sm:$0xff]
          %v235 = vld [vmem:[%s2 + $0x8] sm:$0xff]
          %v236 = vld [vmem:[%s2 + $0x10] sm:$0xff]
          %v237 = vld [vmem:[%s2 + $0x18] sm:$0xff]
          %v238 = vld [vmem:[%s3] sm:$0x1]
          %v240 = vsel %vm218, %v233, 0
          %242 = vmatprep.subr.mxu0 0.0
          %243 = vmatpush1.msra.mxu0 0.0
          %244 = vmatprep.subr.mxu0 0.0
          %245 = vmatpush1.msra.mxu0 0.0
          %246 = vmatprep.subr.mxu0 0.0
          %247 = vmatpush1.msra.mxu0 0.0
          %248 = vmatprep.subr.mxu0 0.0
          %249 = vmatpush1.msra.mxu0 0.0
          %250 = vmatprep.subr.mxu0 0.0
          %251 = vmatpush1.msra.mxu0 0.0
          %252 = vmatprep.subr.mxu0 0.0
          %253 = vmatpush1.msra.mxu0 0.0
          %254 = vmatprep.subr.mxu0 0.0
          %255 = vmatpush1.msra.mxu0 0.0
          %256 = vmatprep.subr.mxu0 0.0
          %257 = vmatpush1.msra.mxu0 0.0
          %258 = vmatprep.subr.mxu0 0.0
          %259 = vmatpush1.msra.mxu0 0.0
          %260 = vmatprep.subr.mxu0 0.0
          %261 = vmatpush1.msra.mxu0 0.0
          %262 = vmatprep.subr.mxu0 0.0
          %263 = vmatpush1.msra.mxu0 0.0
          %264 = vmatprep.subr.mxu0 0.0
          %265 = vmatpush1.msra.mxu0 0.0
          %266 = vmatprep.subr.mxu0 0.0
          %267 = vmatpush1.msra.mxu0 %v237
          %268 = vmatprep.subr.mxu0 0.0
          %269 = vmatpush1.msra.mxu0 %v236
          %270 = vmatprep.subr.mxu0 0.0
          %271 = vmatpush1.msra.mxu0 %v235
          %272 = vmatprep.subr.mxu0 0.0
          %273 = vmatpush1.msra.mxu0 %v234
          %274 = vmatprep.subr.mxu0 0.0
          %275 = vmatpush2.msra.mxu0 0.0
          %276 = vmatprep.subr.mxu0 0.0
          %277 = vmatpush2.msra.mxu0 0.0
          %278 = vmatprep.subr.mxu0 0.0
          %279 = vmatpush2.msra.mxu0 0.0
          %280 = vmatprep.subr.mxu0 0.0
          %281 = vmatpush2.msra.mxu0 0.0
          %282 = vmatprep.subr.mxu0 0.0
          %283 = vmatpush2.msra.mxu0 0.0
          %284 = vmatprep.subr.mxu0 0.0
          %285 = vmatpush2.msra.mxu0 0.0
          %286 = vmatprep.subr.mxu0 0.0
          %287 = vmatpush2.msra.mxu0 0.0
          %288 = vmatprep.subr.mxu0 0.0
          %289 = vmatpush2.msra.mxu0 0.0
          %290 = vmatprep.subr.mxu0 0.0
          %291 = vmatpush2.msra.mxu0 0.0
          %292 = vmatprep.subr.mxu0 0.0
          %293 = vmatpush2.msra.mxu0 0.0
          %294 = vmatprep.subr.mxu0 0.0
          %295 = vmatpush2.msra.mxu0 0.0
          %296 = vmatprep.subr.mxu0 0.0
          %297 = vmatpush2.msra.mxu0 0.0
          %298 = vmatprep.subr.mxu0 0.0
          %299 = vmatpush2.msra.mxu0 0.0
          %300 = vmatprep.subr.mxu0 0.0
          %301 = vmatpush2.msra.mxu0 0.0
          %302 = vmatprep.subr.mxu0 0.0
          %303 = vmatpush2.msra.mxu0 0.0
          %304 = vmatprep.subr.mxu0 0.0
          %305 = vmatpush2.msra.mxu0 0.0
          %306 = vmatprep.mubr.f32.mxu0 0.0
          %307 = vmatmul.mubr.f32.gmra.mxu0 %v240
          %v308 = vpop.f32.mrf.mxu0
          %v309 = vadd.f32 %v238, %v308
          %v310 = vpop.f32.mrf.mxu0
          %311 = vdwg.mxu0
          %vm312 = vcmask 24576
          %313 = vst.msk [vmem:[%s208] sm:$0x1] %vm312, %v309
        $region44: #{tpu_custom_call.1} parent=31 // pred_fallthru
          _
        %s314 = sand.u32 %s116, 1
        %s315 = scalar_lea.sflag [#allocation7], %s314
        %s316 = sand.u32 %s116, 1
        %s317 = scalar_lea.vmem [#allocation8], %s316
        // Predicated region
        $region45: #{tpu_custom_call.1} parent=31 // pred_check
          %p318 = pneg %p126
        $region46: #{tpu_custom_call.1} parent=31 // pred_check_branch
          %320 = sbr.rel (%p318) target = $region48
        $region47: #{tpu_custom_call.1} parent=31 // pred_region
          %s322 = ssub.s32 16, 16
          %323 = vsyncadd %s315, %s322
          %s324 = smul.addr %s26, 16
          %s325 = scalar_lea.hbm %s4, %s324
          %s327 = sshll.u32 %s317, 4
          %s328 = int_to_ptr.vmem [resolvable:$true] %s327
          %330 = dma.vmem_to_hbm [thread:$0]  %s328, 16, %s325, %s315
        $region48: #{tpu_custom_call.1} parent=31 // pred_fallthru
          _
      $region32: #{tpu_custom_call.1} parent=5 // pred_fallthru
        _
      %p331 = scmp.le.s32.totalorder 2, %s17
      // Predicated region
      $region49: #{tpu_custom_call.1} parent=5 // pred_check
        %p332 = pneg %p331
      $region50: #{tpu_custom_call.1} parent=5 // pred_check_branch
        %334 = sbr.rel (%p332) target = $region52
      $region51: #{tpu_custom_call.1} parent=5 // pred_region
        %s335 = ssub.s32 %s17, 2
        // Predicated region
        $region53: #{tpu_custom_call.1} parent=51 // pred_check
          %p336 = pneg %p132
        $region54: #{tpu_custom_call.1} parent=51 // pred_check_branch
          %338 = sbr.rel (%p336) target = $region56
        $region55: #{tpu_custom_call.1} parent=51 // pred_region
          %s339 = sand.u32 %s117, 1
          %s340 = scalar_lea.sflag [#allocation7], %s339
          %s341 = sand.u32 %s117, 1
          %s342 = scalar_lea.vmem [#allocation8], %s341
          %343 = dma.done %s340, 16
        $region56: #{tpu_custom_call.1} parent=51 // pred_fallthru
          _
      $region52: #{tpu_custom_call.1} parent=5 // pred_fallthru
        _
    $region6: #{tpu_custom_call.1} parent=1 // loop_footer
      %s21 = sadd.s32 1, %s17
    $region7: #{tpu_custom_call.1} parent=1 // loop_footer_branch
      %16 = sbr.rel target = $region3
    $region8: #{tpu_custom_call.1} parent=1 // loop_exit
      _
    %344 = vsyncpa [#allocation6], 1
    %s345 = scalar_lea.sflag [#allocation6], 1
    %346 = vsyncpa %s345, 1
    %347 = vsyncpa [#allocation7], 1
    %s348 = scalar_lea.sflag [#allocation7], 1
    %349 = vsyncpa %s348, 1

</llo_original>
